<compile_context>
chip_gen: v6e
topology: v6e:2x2x1
jax: 0.10.0
libtpu: 0.0.40
codegen_flags: <defaults>
</compile_context>

<pallas_src>
import math

import jax
import jax.numpy as jnp
from jax.experimental import pallas as pl
from jax.experimental.pallas import tpu as pltpu

LN_EPS = 1e-5  # torch.nn.LayerNorm default


def _round_up(x, m):
    return (x + m - 1) // m * m


def _layernorm_fused(x, gamma, beta):
    # Single-pass statistics: var = E[x^2] - mu^2 (one traversal instead of two
    # sequential mean reductions -> fewer XLU cross-lane passes).
    mu = jnp.mean(x, axis=-1, keepdims=True)
    ex2 = jnp.mean(x * x, axis=-1, keepdims=True)
    var = ex2 - mu * mu
    return (x - mu) * jax.lax.rsqrt(var + LN_EPS) * gamma + beta


def _layernorm_ref(x, gamma, beta):
    # Two-pass form matching torch.nn.LayerNorm exactly (reference only).
    mu = jnp.mean(x, axis=-1, keepdims=True)
    var = jnp.mean(jnp.square(x - mu), axis=-1, keepdims=True)
    return (x - mu) * jax.lax.rsqrt(var + LN_EPS) * gamma + beta


def _gelu_exact(x):
    # torch.nn.GELU() default = exact erf formulation (kept for fidelity).
    return 0.5 * x * (1.0 + jax.lax.erf(x * (1.0 / math.sqrt(2.0))))


# ---------------------------------------------------------------------------
# Kernel 1: transformer blocks (+ final LayerNorm).
# grid = (row_tiles, layers); layers streamed on the "arbitrary" axis,
# residual carried in a persistent VMEM scratch.
# ---------------------------------------------------------------------------
def _blocks_kernel(x_ref,
                   ln1g_ref, ln1b_ref, ln2g_ref, ln2b_ref,
                   w1_ref, b1_ref, w2_ref, b2_ref,
                   lnfg_ref, lnfb_ref,
                   o_ref, acc_ref):
    l = pl.program_id(1)

    @pl.when(l == 0)
    def _():
        acc_ref[...] = x_ref[...]

    x = acc_ref[...]                                    # (TM, H) residual

    # Attention sub-layer == identity on LayerNorm1(x) (see note above).
    x = x + _layernorm_fused(x, ln1g_ref[0], ln1b_ref[0])

    # MLP sub-layer (Dropout -> identity in eval / p=0).
    h = _layernorm_fused(x, ln2g_ref[0], ln2b_ref[0])
    h = jnp.dot(h, w1_ref[0], preferred_element_type=jnp.float32) + b1_ref[0]
    h = _gelu_exact(h)
    x = x + jnp.dot(h, w2_ref[0], preferred_element_type=jnp.float32) + b2_ref[0]

    acc_ref[...] = x

    @pl.when(l == pl.num_programs(1) - 1)
    def _():
        o_ref[...] = _layernorm_fused(x, lnfg_ref[...], lnfb_ref[...])


# ---------------------------------------------------------------------------
# Kernel 2: tied lm_head matmul, grid = (row_tiles, vocab_tiles), vocab padded
# to a multiple of 128 so output stores are lane-dense.
# ---------------------------------------------------------------------------
def _lm_head_kernel(x_ref, w_ref, o_ref):
    o_ref[...] = jnp.dot(x_ref[...], w_ref[...],
                         preferred_element_type=jnp.float32)


def llama_pipe_stage(idx, params):
    """idx: (B, S) int32 token ids.  Returns logits (B, S, V) float32."""
    B, S = idx.shape
    L, H, H4 = params["w1"].shape
    V = params["wlm"].shape[1]
    M = B * S

    # ----- glue: embedding gather + positional add, fold (B, S) -> M rows ----
    tok = jnp.take(params["embd"], idx, axis=0)                 # (B, S, H)
    x0 = (tok + params["pos"][None, :S, :]).reshape(M, H)

    # Row tile: the whole problem in one tile at demo size; cap at 256 rows
    # for real sizes (fits a 64 MiB v7x VMEM budget with streamed weights).
    TM = min(256, _round_up(M, 8))
    Mpad = _round_up(M, TM)
    if Mpad != M:
        x0 = jnp.pad(x0, ((0, Mpad - M), (0, 0)))

    # Reshape per-layer vectors so the layer axis blocks cleanly: (L, 1, width).
    ln1g = params["ln1g"].reshape(L, 1, H)
    ln1b = params["ln1b"].reshape(L, 1, H)
    ln2g = params["ln2g"].reshape(L, 1, H)
    ln2b = params["ln2b"].reshape(L, 1, H)
    b1 = params["b1"].reshape(L, 1, H4)
    b2 = params["b2"].reshape(L, 1, H)

    def layer_spec(shape):
        return pl.BlockSpec(shape, lambda m, l: (l, 0, 0))

    def const_spec(shape):
        return pl.BlockSpec(shape, lambda m, l: (0, 0))

    # TODO(synk): for very large hidden dims (H >= ~4096 in f32) additionally
    # tile the FFN inner (4H) axis so a single layer's W1/W2 panel fits VMEM.
    x = pl.pallas_call(
        _blocks_kernel,
        out_shape=jax.ShapeDtypeStruct((Mpad, H), jnp.float32),
        grid=(Mpad // TM, L),
        in_specs=[
            pl.BlockSpec((TM, H), lambda m, l: (m, 0)),    # x0 (row tile)
            layer_spec((1, 1, H)),                         # ln1 gamma
            layer_spec((1, 1, H)),                         # ln1 beta
            layer_spec((1, 1, H)),                         # ln2 gamma
            layer_spec((1, 1, H)),                         # ln2 beta
            layer_spec((1, H, H4)),                        # w1 (streamed/layer)
            layer_spec((1, 1, H4)),                        # b1
            layer_spec((1, H4, H)),                        # w2 (streamed/layer)
            layer_spec((1, 1, H)),                         # b2
            const_spec((1, H)),                            # lnf gamma
            const_spec((1, H)),                            # lnf beta
        ],
        out_specs=pl.BlockSpec((TM, H), lambda m, l: (m, 0)),
        scratch_shapes=[pltpu.VMEM((TM, H), jnp.float32)],
        compiler_params=pltpu.CompilerParams(
            dimension_semantics=("parallel", "arbitrary")),
    )(x0, ln1g, ln1b, ln2g, ln2b,
      params["w1"], b1, params["w2"], b2,
      params["lnfg"], params["lnfb"])

    # ----- lm_head: pad vocab to a lane-dense multiple of 128 and tile it ----
    Vpad = _round_up(V, 128)
    wlm = params["wlm"]                                   # (H, V), tied, pre-T at init
    if Vpad != V:
        wlm = jnp.pad(wlm, ((0, 0), (0, Vpad - V)))
    TV = 512 if Vpad % 512 == 0 else (256 if Vpad % 256 == 0 else 128)

    logits = pl.pallas_call(
        _lm_head_kernel,
        out_shape=jax.ShapeDtypeStruct((Mpad, Vpad), jnp.float32),
        grid=(Mpad // TM, Vpad // TV),
        in_specs=[
            pl.BlockSpec((TM, H), lambda m, v: (m, 0)),    # x row tile (reused over v)
            pl.BlockSpec((H, TV), lambda m, v: (0, v)),    # wlm vocab panel
        ],
        out_specs=pl.BlockSpec((TM, TV), lambda m, v: (m, v)),
        compiler_params=pltpu.CompilerParams(
            dimension_semantics=("parallel", "parallel")),
    )(x, wlm)

    return logits[:M, :V].reshape(B, S, V)


def reference_stage(idx, params):
    """Pure-JAX reference replicating the PyTorch forward semantics."""
    tok = jnp.take(params["embd"], idx, axis=0)
    x = tok + params["pos"][: idx.shape[1]]
    L = params["w1"].shape[0]
    for l in range(L):
        x = x + _layernorm_ref(x, params["ln1g"][l], params["ln1b"][l])
        h = _layernorm_ref(x, params["ln2g"][l], params["ln2b"][l])
        h = _gelu_exact(h @ params["w1"][l] + params["b1"][l])
        x = x + (h @ params["w2"][l] + params["b2"][l])
    x = _layernorm_ref(x, params["lnfg"], params["lnfb"])
    return x @ params["wlm"]


def make_params(key, *, n_blocks, hidden, vocab, max_seq):
    std = 0.02
    ks = jax.random.split(key, 4)
    embd = (jax.random.normal(ks[0], (vocab, hidden)) * std).astype(jnp.float32)
    return {
        "embd": embd,
        "pos": (jax.random.normal(ks[1], (max_seq, hidden)) * std).astype(jnp.float32),
        "ln1g": jnp.ones((n_blocks, hidden), jnp.float32),
        "ln1b": jnp.zeros((n_blocks, hidden), jnp.float32),
        "ln2g": jnp.ones((n_blocks, hidden), jnp.float32),
        "ln2b": jnp.zeros((n_blocks, hidden), jnp.float32),
        "w1": (jax.random.normal(ks[2], (n_blocks, hidden, 4 * hidden)) * std).astype(jnp.float32),
        "b1": jnp.zeros((n_blocks, 4 * hidden), jnp.float32),
        "w2": (jax.random.normal(ks[3], (n_blocks, 4 * hidden, hidden)) * std).astype(jnp.float32),
        "b2": jnp.zeros((n_blocks, hidden), jnp.float32),
        "lnfg": jnp.ones((1, hidden), jnp.float32),
        "lnfb": jnp.zeros((1, hidden), jnp.float32),
        # Weight tying: lm_head.weight = token_embd_table.weight.
        # Stored pre-transposed ONCE at init (no per-call HBM transpose).
        "wlm": embd.T,
    }


if __name__ == "__main__":
    # Small config consistent with the module:
    # vocab=64, hidden=32, max_seq=16, dropout=0 (identity), one Block
    # (block_range slicing blocks[0:1]); the demo exercises the composed
    # first+last pipeline, i.e. embedding -> block -> final LN -> lm_head.
    B, S, H, V, MAX_SEQ = 2, 8, 32, 64, 16
    N_BLOCKS = 1

    key = jax.random.PRNGKey(0)
    kp, ki = jax.random.split(key)
    params = make_params(kp, n_blocks=N_BLOCKS, hidden=H, vocab=V, max_seq=MAX_SEQ)
    idx = jax.random.randint(ki, (B, S), 0, V, dtype=jnp.int32)

    logits = jax.jit(llama_pipe_stage)(idx, params)
    jax.block_until_ready(logits)

    ref = reference_stage(idx, params)
    assert logits.shape == (B, S, V), logits.shape
    # Slightly relaxed tolerance to accommodate the fused one-pass LayerNorm
    # statistics (E[x^2]-mu^2); deltas are ~1e-6 at these magnitudes.
    assert jnp.allclose(logits, ref, atol=2e-4, rtol=2e-4), "mismatch vs reference"
    print("KERNEL_OK")
</pallas_src>

<mosaic_0001>
module attributes {stable_mosaic.version = 11 : i64} {
  func.func @_lm_head_kernel(%arg0: i32, %arg1: i32, %arg2: memref<16x32xf32, #tpu.memory_space<vmem>>, %arg3: memref<32x128xf32, #tpu.memory_space<vmem>>, %arg4: memref<16x128xf32, #tpu.memory_space<vmem>>) attributes {dimension_semantics = [#tpu.dimension_semantics<parallel>, #tpu.dimension_semantics<parallel>], iteration_bounds = array<i64: 1, 1>, scalar_prefetch = 0 : i64, scratch_operands = 0 : i64, tpu.core_type = #tpu.core_type<tc>, window_params = [{transform_indices = @transform_0, window_bounds = array<i64: 16, 32>}, {transform_indices = @transform_1, window_bounds = array<i64: 32, 128>}, {transform_indices = @transform_2, window_bounds = array<i64: 16, 128>}]} {
    %c0 = arith.constant 0 : index
    %c0_0 = arith.constant 0 : index
    %0 = vector.load %arg2[%c0, %c0_0] : memref<16x32xf32, #tpu.memory_space<vmem>>, vector<16x32xf32>
    %c0_1 = arith.constant 0 : index
    %c0_2 = arith.constant 0 : index
    %1 = vector.load %arg3[%c0_1, %c0_2] : memref<32x128xf32, #tpu.memory_space<vmem>>, vector<32x128xf32>
    %cst = arith.constant dense<0.000000e+00> : vector<16x128xf32>
    %2 = tpu.matmul %0, %1, %cst {dimension_numbers = #tpu.dot_dimension_numbers<[1], [0], [0], [1], [0, 0, 1, 1], [], []>} : vector<16x32xf32>, vector<32x128xf32>, vector<16x128xf32> -> vector<16x128xf32>
    %c0_3 = arith.constant 0 : index
    %c0_4 = arith.constant 0 : index
    %3 = vector.load %arg4[%c0_3, %c0_4] : memref<16x128xf32, #tpu.memory_space<vmem>>, vector<16x128xf32>
    tpu.vector_store %arg4[%c0_3, %c0_4], %2 {strides = array<i32>} : memref<16x128xf32, #tpu.memory_space<vmem>>, vector<16x128xf32>,
    return
  }
  func.func @transform_0(%arg0: i32, %arg1: i32) -> (i32, i32) {
    %c0_i32 = arith.constant 0 : i32
    %c0_i32_0 = arith.constant 0 : i32
    return %arg0, %c0_i32 : i32, i32
  }
  func.func @transform_1(%arg0: i32, %arg1: i32) -> (i32, i32) {
    %c0_i32 = arith.constant 0 : i32
    %c0_i32_0 = arith.constant 0 : i32
    return %c0_i32, %arg1 : i32, i32
  }
  func.func @transform_2(%arg0: i32, %arg1: i32) -> (i32, i32) {
    %c0_i32 = arith.constant 0 : i32
    return %arg0, %arg1 : i32, i32
  }
}

module attributes {stable_mosaic.version = 11 : i64} {
  func.func @_blocks_kernel(%arg0: i32, %arg1: i32, %arg2: memref<16x32xf32, #tpu.memory_space<vmem>>, %arg3: memref<1x1x32xf32, #tpu.memory_space<vmem>>, %arg4: memref<1x1x32xf32, #tpu.memory_space<vmem>>, %arg5: memref<1x1x32xf32, #tpu.memory_space<vmem>>, %arg6: memref<1x1x32xf32, #tpu.memory_space<vmem>>, %arg7: memref<1x32x128xf32, #tpu.memory_space<vmem>>, %arg8: memref<1x1x128xf32, #tpu.memory_space<vmem>>, %arg9: memref<1x128x32xf32, #tpu.memory_space<vmem>>, %arg10: memref<1x1x32xf32, #tpu.memory_space<vmem>>, %arg11: memref<1x32xf32, #tpu.memory_space<vmem>>, %arg12: memref<1x32xf32, #tpu.memory_space<vmem>>, %arg13: memref<16x32xf32, #tpu.memory_space<vmem>>, %arg14: memref<16x32xf32, #tpu.memory_space<vmem>>) attributes {dimension_semantics = [#tpu.dimension_semantics<parallel>, #tpu.dimension_semantics<arbitrary>], iteration_bounds = array<i64: 1, 1>, scalar_prefetch = 0 : i64, scratch_operands = 1 : i64, tpu.core_type = #tpu.core_type<tc>, window_params = [{transform_indices = @transform_0, window_bounds = array<i64: 16, 32>}, {transform_indices = @transform_1, window_bounds = array<i64: 1, 1, 32>}, {transform_indices = @transform_2, window_bounds = array<i64: 1, 1, 32>}, {transform_indices = @transform_3, window_bounds = array<i64: 1, 1, 32>}, {transform_indices = @transform_4, window_bounds = array<i64: 1, 1, 32>}, {transform_indices = @transform_5, window_bounds = array<i64: 1, 32, 128>}, {transform_indices = @transform_6, window_bounds = array<i64: 1, 1, 128>}, {transform_indices = @transform_7, window_bounds = array<i64: 1, 128, 32>}, {transform_indices = @transform_8, window_bounds = array<i64: 1, 1, 32>}, {pipeline_mode = #tpu.pipeline_mode<synchronous>, transform_indices = @transform_9, window_bounds = array<i64: 1, 32>}, {pipeline_mode = #tpu.pipeline_mode<synchronous>, transform_indices = @transform_10, window_bounds = array<i64: 1, 32>}, {transform_indices = @transform_11, window_bounds = array<i64: 16, 32>}]} {
    %c0_i32 = arith.constant 0 : i32
    %0 = arith.cmpi eq, %arg1, %c0_i32 : i32
    %1 = arith.extui %0 : i1 to i32
    %c0_i32_0 = arith.constant 0 : i32
    %2 = arith.cmpi ne, %1, %c0_i32_0 : i32
    scf.if %2 {
      %c0_44 = arith.constant 0 : index
      %c0_45 = arith.constant 0 : index
      %84 = vector.load %arg2[%c0_44, %c0_45] : memref<16x32xf32, #tpu.memory_space<vmem>>, vector<16x32xf32>
      %c0_46 = arith.constant 0 : index
      %c0_47 = arith.constant 0 : index
      %85 = vector.load %arg14[%c0_46, %c0_47] : memref<16x32xf32, #tpu.memory_space<vmem>>, vector<16x32xf32>
      tpu.vector_store %arg14[%c0_46, %c0_47], %84 {strides = array<i32>} : memref<16x32xf32, #tpu.memory_space<vmem>>, vector<16x32xf32>,
    } else {
    }
    %c0 = arith.constant 0 : index
    %c0_1 = arith.constant 0 : index
    %3 = vector.load %arg14[%c0, %c0_1] : memref<16x32xf32, #tpu.memory_space<vmem>>, vector<16x32xf32>
    %c0_2 = arith.constant 0 : index
    %c0_3 = arith.constant 0 : index
    %c0_4 = arith.constant 0 : index
    %4 = vector.load %arg3[%c0_2, %c0_3, %c0_4] : memref<1x1x32xf32, #tpu.memory_space<vmem>>, vector<1x1x32xf32>
    %5 = vector.shape_cast %4 : vector<1x1x32xf32> to vector<1x32xf32>
    %c0_5 = arith.constant 0 : index
    %c0_6 = arith.constant 0 : index
    %c0_7 = arith.constant 0 : index
    %6 = vector.load %arg4[%c0_5, %c0_6, %c0_7] : memref<1x1x32xf32, #tpu.memory_space<vmem>>, vector<1x1x32xf32>
    %7 = vector.shape_cast %6 : vector<1x1x32xf32> to vector<1x32xf32>
    %cst = arith.constant dense<0.000000e+00> : vector<16xf32>
    %8 = vector.multi_reduction <add>, %3, %cst [1] : vector<16x32xf32> to vector<16xf32>
    %9 = vector.shape_cast %8 : vector<16xf32> to vector<16x1xf32>
    %cst_8 = arith.constant 3.200000e+01 : f32
    %10 = vector.broadcast %cst_8 : f32 to vector<16x1xf32>
    %11 = arith.divf %9, %10 : vector<16x1xf32>
    %12 = arith.mulf %3, %3 : vector<16x32xf32>
    %cst_9 = arith.constant dense<0.000000e+00> : vector<16xf32>
    %13 = vector.multi_reduction <add>, %12, %cst_9 [1] : vector<16x32xf32> to vector<16xf32>
    %14 = vector.shape_cast %13 : vector<16xf32> to vector<16x1xf32>
    %cst_10 = arith.constant 3.200000e+01 : f32
    %15 = vector.broadcast %cst_10 : f32 to vector<16x1xf32>
    %16 = arith.divf %14, %15 : vector<16x1xf32>
    %17 = arith.mulf %11, %11 : vector<16x1xf32>
    %18 = arith.subf %16, %17 : vector<16x1xf32>
    %19 = vector.broadcast %11 : vector<16x1xf32> to vector<16x32xf32>
    %20 = arith.subf %3, %19 : vector<16x32xf32>
    %cst_11 = arith.constant 9.99999974E-6 : f32
    %21 = vector.broadcast %cst_11 : f32 to vector<16x1xf32>
    %22 = arith.addf %18, %21 : vector<16x1xf32>
    %23 = math.rsqrt %22 : vector<16x1xf32>
    %24 = vector.broadcast %23 : vector<16x1xf32> to vector<16x32xf32>
    %25 = arith.mulf %20, %24 : vector<16x32xf32>
    %26 = vector.broadcast %5 : vector<1x32xf32> to vector<16x32xf32>
    %27 = arith.mulf %25, %26 : vector<16x32xf32>
    %28 = vector.broadcast %7 : vector<1x32xf32> to vector<16x32xf32>
    %29 = arith.addf %27, %28 : vector<16x32xf32>
    %30 = arith.addf %3, %29 : vector<16x32xf32>
    %c0_12 = arith.constant 0 : index
    %c0_13 = arith.constant 0 : index
    %c0_14 = arith.constant 0 : index
    %31 = vector.load %arg5[%c0_12, %c0_13, %c0_14] : memref<1x1x32xf32, #tpu.memory_space<vmem>>, vector<1x1x32xf32>
    %32 = vector.shape_cast %31 : vector<1x1x32xf32> to vector<1x32xf32>
    %c0_15 = arith.constant 0 : index
    %c0_16 = arith.constant 0 : index
    %c0_17 = arith.constant 0 : index
    %33 = vector.load %arg6[%c0_15, %c0_16, %c0_17] : memref<1x1x32xf32, #tpu.memory_space<vmem>>, vector<1x1x32xf32>
    %34 = vector.shape_cast %33 : vector<1x1x32xf32> to vector<1x32xf32>
    %cst_18 = arith.constant dense<0.000000e+00> : vector<16xf32>
    %35 = vector.multi_reduction <add>, %30, %cst_18 [1] : vector<16x32xf32> to vector<16xf32>
    %36 = vector.shape_cast %35 : vector<16xf32> to vector<16x1xf32>
    %cst_19 = arith.constant 3.200000e+01 : f32
    %37 = vector.broadcast %cst_19 : f32 to vector<16x1xf32>
    %38 = arith.divf %36, %37 : vector<16x1xf32>
    %39 = arith.mulf %30, %30 : vector<16x32xf32>
    %cst_20 = arith.constant dense<0.000000e+00> : vector<16xf32>
    %40 = vector.multi_reduction <add>, %39, %cst_20 [1] : vector<16x32xf32> to vector<16xf32>
    %41 = vector.shape_cast %40 : vector<16xf32> to vector<16x1xf32>
    %cst_21 = arith.constant 3.200000e+01 : f32
    %42 = vector.broadcast %cst_21 : f32 to vector<16x1xf32>
    %43 = arith.divf %41, %42 : vector<16x1xf32>
    %44 = arith.mulf %38, %38 : vector<16x1xf32>
    %45 = arith.subf %43, %44 : vector<16x1xf32>
    %46 = vector.broadcast %38 : vector<16x1xf32> to vector<16x32xf32>
    %47 = arith.subf %30, %46 : vector<16x32xf32>
    %cst_22 = arith.constant 9.99999974E-6 : f32
    %48 = vector.broadcast %cst_22 : f32 to vector<16x1xf32>
    %49 = arith.addf %45, %48 : vector<16x1xf32>
    %50 = math.rsqrt %49 : vector<16x1xf32>
    %51 = vector.broadcast %50 : vector<16x1xf32> to vector<16x32xf32>
    %52 = arith.mulf %47, %51 : vector<16x32xf32>
    %53 = vector.broadcast %32 : vector<1x32xf32> to vector<16x32xf32>
    %54 = arith.mulf %52, %53 : vector<16x32xf32>
    %55 = vector.broadcast %34 : vector<1x32xf32> to vector<16x32xf32>
    %56 = arith.addf %54, %55 : vector<16x32xf32>
    %c0_23 = arith.constant 0 : index
    %c0_24 = arith.constant 0 : index
    %c0_25 = arith.constant 0 : index
    %57 = vector.load %arg7[%c0_23, %c0_24, %c0_25] : memref<1x32x128xf32, #tpu.memory_space<vmem>>, vector<1x32x128xf32>
    %58 = vector.shape_cast %57 : vector<1x32x128xf32> to vector<32x128xf32>
    %cst_26 = arith.constant dense<0.000000e+00> : vector<16x128xf32>
    %59 = tpu.matmul %56, %58, %cst_26 {dimension_numbers = #tpu.dot_dimension_numbers<[1], [0], [0], [1], [0, 0, 1, 1], [], []>} : vector<16x32xf32>, vector<32x128xf32>, vector<16x128xf32> -> vector<16x128xf32>
    %c0_27 = arith.constant 0 : index
    %c0_28 = arith.constant 0 : index
    %c0_29 = arith.constant 0 : index
    %60 = vector.load %arg8[%c0_27, %c0_28, %c0_29] : memref<1x1x128xf32, #tpu.memory_space<vmem>>, vector<1x1x128xf32>
    %61 = vector.shape_cast %60 : vector<1x1x128xf32> to vector<1x128xf32>
    %62 = vector.broadcast %61 : vector<1x128xf32> to vector<16x128xf32>
    %63 = arith.addf %59, %62 : vector<16x128xf32>
    %cst_30 = arith.constant 5.000000e-01 : f32
    %64 = vector.broadcast %cst_30 : f32 to vector<16x128xf32>
    %65 = arith.mulf %64, %63 : vector<16x128xf32>
    %cst_31 = arith.constant 0.707106769 : f32
    %66 = vector.broadcast %cst_31 : f32 to vector<16x128xf32>
    %67 = arith.mulf %63, %66 : vector<16x128xf32>
    %68 = math.erf %67 : vector<16x128xf32>
    %cst_32 = arith.constant 1.000000e+00 : f32
    %69 = vector.broadcast %cst_32 : f32 to vector<16x128xf32>
    %70 = arith.addf %69, %68 : vector<16x128xf32>
    %71 = arith.mulf %65, %70 : vector<16x128xf32>
    %c0_33 = arith.constant 0 : index
    %c0_34 = arith.constant 0 : index
    %c0_35 = arith.constant 0 : index
    %72 = vector.load %arg9[%c0_33, %c0_34, %c0_35] : memref<1x128x32xf32, #tpu.memory_space<vmem>>, vector<1x128x32xf32>
    %73 = vector.shape_cast %72 : vector<1x128x32xf32> to vector<128x32xf32>
    %cst_36 = arith.constant dense<0.000000e+00> : vector<16x32xf32>
    %74 = tpu.matmul %71, %73, %cst_36 {dimension_numbers = #tpu.dot_dimension_numbers<[1], [0], [0], [1], [0, 0, 1, 1], [], []>} : vector<16x128xf32>, vector<128x32xf32>, vector<16x32xf32> -> vector<16x32xf32>
    %75 = arith.addf %30, %74 : vector<16x32xf32>
    %c0_37 = arith.constant 0 : index
    %c0_38 = arith.constant 0 : index
    %c0_39 = arith.constant 0 : index
    %76 = vector.load %arg10[%c0_37, %c0_38, %c0_39] : memref<1x1x32xf32, #tpu.memory_space<vmem>>, vector<1x1x32xf32>
    %77 = vector.shape_cast %76 : vector<1x1x32xf32> to vector<1x32xf32>
    %78 = vector.broadcast %77 : vector<1x32xf32> to vector<16x32xf32>
    %79 = arith.addf %75, %78 : vector<16x32xf32>
    %c0_40 = arith.constant 0 : index
    %c0_41 = arith.constant 0 : index
    %80 = vector.load %arg14[%c0_40, %c0_41] : memref<16x32xf32, #tpu.memory_space<vmem>>, vector<16x32xf32>
    tpu.vector_store %arg14[%c0_40, %c0_41], %79 {strides = array<i32>} : memref<16x32xf32, #tpu.memory_space<vmem>>, vector<16x32xf32>,
    %c0_i32_42 = arith.constant 0 : i32
    %81 = arith.cmpi eq, %arg1, %c0_i32_42 : i32
    %82 = arith.extui %81 : i1 to i32
    %c0_i32_43 = arith.constant 0 : i32
    %83 = arith.cmpi ne, %82, %c0_i32_43 : i32
    scf.if %83 {
      %c0_44 = arith.constant 0 : index
      %c0_45 = arith.constant 0 : index
      %84 = vector.load %arg11[%c0_44, %c0_45] : memref<1x32xf32, #tpu.memory_space<vmem>>, vector<1x32xf32>
      %c0_46 = arith.constant 0 : index
      %c0_47 = arith.constant 0 : index
      %85 = vector.load %arg12[%c0_46, %c0_47] : memref<1x32xf32, #tpu.memory_space<vmem>>, vector<1x32xf32>
      %cst_48 = arith.constant dense<0.000000e+00> : vector<16xf32>
      %86 = vector.multi_reduction <add>, %79, %cst_48 [1] : vector<16x32xf32> to vector<16xf32>
      %87 = vector.shape_cast %86 : vector<16xf32> to vector<16x1xf32>
      %cst_49 = arith.constant 3.200000e+01 : f32
      %88 = vector.broadcast %cst_49 : f32 to vector<16x1xf32>
      %89 = arith.divf %87, %88 : vector<16x1xf32>
      %90 = arith.mulf %79, %79 : vector<16x32xf32>
      %cst_50 = arith.constant dense<0.000000e+00> : vector<16xf32>
      %91 = vector.multi_reduction <add>, %90, %cst_50 [1] : vector<16x32xf32> to vector<16xf32>
      %92 = vector.shape_cast %91 : vector<16xf32> to vector<16x1xf32>
      %cst_51 = arith.constant 3.200000e+01 : f32
      %93 = vector.broadcast %cst_51 : f32 to vector<16x1xf32>
      %94 = arith.divf %92, %93 : vector<16x1xf32>
      %95 = arith.mulf %89, %89 : vector<16x1xf32>
      %96 = arith.subf %94, %95 : vector<16x1xf32>
      %97 = vector.broadcast %89 : vector<16x1xf32> to vector<16x32xf32>
      %98 = arith.subf %79, %97 : vector<16x32xf32>
      %cst_52 = arith.constant 9.99999974E-6 : f32
      %99 = vector.broadcast %cst_52 : f32 to vector<16x1xf32>
      %100 = arith.addf %96, %99 : vector<16x1xf32>
      %101 = math.rsqrt %100 : vector<16x1xf32>
      %102 = vector.broadcast %101 : vector<16x1xf32> to vector<16x32xf32>
      %103 = arith.mulf %98, %102 : vector<16x32xf32>
      %104 = vector.broadcast %84 : vector<1x32xf32> to vector<16x32xf32>
      %105 = arith.mulf %103, %104 : vector<16x32xf32>
      %106 = vector.broadcast %85 : vector<1x32xf32> to vector<16x32xf32>
      %107 = arith.addf %105, %106 : vector<16x32xf32>
      %c0_53 = arith.constant 0 : index
      %c0_54 = arith.constant 0 : index
      %108 = vector.load %arg13[%c0_53, %c0_54] : memref<16x32xf32, #tpu.memory_space<vmem>>, vector<16x32xf32>
      tpu.vector_store %arg13[%c0_53, %c0_54], %107 {strides = array<i32>} : memref<16x32xf32, #tpu.memory_space<vmem>>, vector<16x32xf32>,
    } else {
    }
    return
  }
  func.func @transform_0(%arg0: i32, %arg1: i32) -> (i32, i32) {
    %c0_i32 = arith.constant 0 : i32
    %c0_i32_0 = arith.constant 0 : i32
    return %arg0, %c0_i32 : i32, i32
  }
  func.func @transform_1(%arg0: i32, %arg1: i32) -> (i32, i32, i32) {
    %c0_i32 = arith.constant 0 : i32
    %c0_i32_0 = arith.constant 0 : i32
    %c0_i32_1 = arith.constant 0 : i32
    return %arg1, %c0_i32, %c0_i32_0 : i32, i32, i32
  }
  func.func @transform_2(%arg0: i32, %arg1: i32) -> (i32, i32, i32) {
    %c0_i32 = arith.constant 0 : i32
    %c0_i32_0 = arith.constant 0 : i32
    %c0_i32_1 = arith.constant 0 : i32
    return %arg1, %c0_i32, %c0_i32_0 : i32, i32, i32
  }
  func.func @transform_3(%arg0: i32, %arg1: i32) -> (i32, i32, i32) {
    %c0_i32 = arith.constant 0 : i32
    %c0_i32_0 = arith.constant 0 : i32
    %c0_i32_1 = arith.constant 0 : i32
    return %arg1, %c0_i32, %c0_i32_0 : i32, i32, i32
  }
  func.func @transform_4(%arg0: i32, %arg1: i32) -> (i32, i32, i32) {
    %c0_i32 = arith.constant 0 : i32
    %c0_i32_0 = arith.constant 0 : i32
    %c0_i32_1 = arith.constant 0 : i32
    return %arg1, %c0_i32, %c0_i32_0 : i32, i32, i32
  }
  func.func @transform_5(%arg0: i32, %arg1: i32) -> (i32, i32, i32) {
    %c0_i32 = arith.constant 0 : i32
    %c0_i32_0 = arith.constant 0 : i32
    %c0_i32_1 = arith.constant 0 : i32
    return %arg1, %c0_i32, %c0_i32_0 : i32, i32, i32
  }
  func.func @transform_6(%arg0: i32, %arg1: i32) -> (i32, i32, i32) {
    %c0_i32 = arith.constant 0 : i32
    %c0_i32_0 = arith.constant 0 : i32
    %c0_i32_1 = arith.constant 0 : i32
    return %arg1, %c0_i32, %c0_i32_0 : i32, i32, i32
  }
  func.func @transform_7(%arg0: i32, %arg1: i32) -> (i32, i32, i32) {
    %c0_i32 = arith.constant 0 : i32
    %c0_i32_0 = arith.constant 0 : i32
    %c0_i32_1 = arith.constant 0 : i32
    return %arg1, %c0_i32, %c0_i32_0 : i32, i32, i32
  }
  func.func @transform_8(%arg0: i32, %arg1: i32) -> (i32, i32, i32) {
    %c0_i32 = arith.constant 0 : i32
    %c0_i32_0 = arith.constant 0 : i32
    %c0_i32_1 = arith.constant 0 : i32
    return %arg1, %c0_i32, %c0_i32_0 : i32, i32, i32
  }
  func.func @transform_9(%arg0: i32, %arg1: i32) -> (i32, i32) {
    %c0_i32 = arith.constant 0 : i32
    %c0_i32_0 = arith.constant 0 : i32
    %c0_i32_1 = arith.constant 0 : i32
    return %c0_i32, %c0_i32_0 : i32, i32
  }
  func.func @transform_10(%arg0: i32, %arg1: i32) -> (i32, i32) {
    %c0_i32 = arith.constant 0 : i32
    %c0_i32_0 = arith.constant 0 : i32
    %c0_i32_1 = arith.constant 0 : i32
    return %c0_i32, %c0_i32_0 : i32, i32
  }
  func.func @transform_11(%arg0: i32, %arg1: i32) -> (i32, i32) {
    %c0_i32 = arith.constant 0 : i32
    %c0_i32_0 = arith.constant 0 : i32
    return %arg0, %c0_i32 : i32, i32
  }
}

</mosaic_0001>

<llo_original>
// kernel: llama_pipe_stage.3
$region0: #{llama_pipe_stage.3}
  #allocation0 [shape = 'u32[]', space=smem, size = 0x4, offset = 0x4, fixed_abs, tag = 'smem constant byte address 0x4 - core index']
  #allocation1 [shape = 'u32[144,128]{1,0:T(1,128)}', space=vmem, size = 0x12000, scoped, tag = 'internal scratch']
  %s0 = inlined_call_operand.vmem [shape: f32[16,32], index: 0, kind: input, shape index: {}]
  %s1 = inlined_call_operand.vmem [shape: f32[32,128], index: 1, kind: input, shape index: {}]
  %s2 = inlined_call_operand.vmem [shape: f32[16,128], index: 2, kind: output, shape index: {}]
  %s3 = sld [smem:[#allocation0]]
  $region18: #{llama_pipe_stage.3} parent=0
    _
  %s5 = ssub.s32 1, %s3
  %s6 = scalar_select 0, %s5, %s3
  // Predicated region
  $region2: #{llama_pipe_stage.3} parent=0 // pred_check
    _
  $region3: #{llama_pipe_stage.3} parent=0 // pred_check_branch
    %8 = sbr.rel (0) target = $region5
  $region4: #{llama_pipe_stage.3} parent=0 // pred_region
    _
  $region5: #{llama_pipe_stage.3} parent=0 // pred_fallthru
    _
  // Predicated region
  $region6: #{llama_pipe_stage.3} parent=0 // pred_check
    _
  $region7: #{llama_pipe_stage.3} parent=0 // pred_check_branch
    %10 = sbr.rel (0) target = $region9
  $region8: #{llama_pipe_stage.3} parent=0 // pred_region
    _
  $region9: #{llama_pipe_stage.3} parent=0 // pred_fallthru
    _
  %v11 = vld [vmem:[%s0] sm:$0xff]
  %v12 = vld [vmem:[%s0 + $0x8] sm:$0xff]
  %v13 = vld [vmem:[%s1] sm:$0xff]
  %v14 = vld [vmem:[%s1 + $0x8] sm:$0xff]
  %v15 = vld [vmem:[%s1 + $0x10] sm:$0xff]
  %v16 = vld [vmem:[%s1 + $0x18] sm:$0xff]
  %vm17 = vcmask 261120
  %v19 = vsel %vm17, %v11, 0
  %v22 = vsel %vm17, %v12, 0
  %24 = vmatprep.subr.mxu0 0.0
  %25 = vmatpush1.msra.mxu0 0.0
  %26 = vmatprep.subr.mxu0 0.0
  %27 = vmatpush1.msra.mxu0 0.0
  %28 = vmatprep.subr.mxu0 0.0
  %29 = vmatpush1.msra.mxu0 0.0
  %30 = vmatprep.subr.mxu0 0.0
  %31 = vmatpush1.msra.mxu0 0.0
  %32 = vmatprep.subr.mxu0 0.0
  %33 = vmatpush1.msra.mxu0 0.0
  %34 = vmatprep.subr.mxu0 0.0
  %35 = vmatpush1.msra.mxu0 0.0
  %36 = vmatprep.subr.mxu0 0.0
  %37 = vmatpush1.msra.mxu0 0.0
  %38 = vmatprep.subr.mxu0 0.0
  %39 = vmatpush1.msra.mxu0 0.0
  %40 = vmatprep.subr.mxu0 0.0
  %41 = vmatpush1.msra.mxu0 0.0
  %42 = vmatprep.subr.mxu0 0.0
  %43 = vmatpush1.msra.mxu0 0.0
  %44 = vmatprep.subr.mxu0 0.0
  %45 = vmatpush1.msra.mxu0 0.0
  %46 = vmatprep.subr.mxu0 0.0
  %47 = vmatpush1.msra.mxu0 0.0
  %48 = vmatprep.subr.mxu0 0.0
  %49 = vmatpush1.msra.mxu0 %v16
  %50 = vmatprep.subr.mxu0 0.0
  %51 = vmatpush1.msra.mxu0 %v15
  %52 = vmatprep.subr.mxu0 0.0
  %53 = vmatpush1.msra.mxu0 %v14
  %54 = vmatprep.subr.mxu0 0.0
  %55 = vmatpush1.msra.mxu0 %v13
  %56 = vmatprep.subr.mxu0 0.0
  %57 = vmatpush2.msra.mxu0 0.0
  %58 = vmatprep.subr.mxu0 0.0
  %59 = vmatpush2.msra.mxu0 0.0
  %60 = vmatprep.subr.mxu0 0.0
  %61 = vmatpush2.msra.mxu0 0.0
  %62 = vmatprep.subr.mxu0 0.0
  %63 = vmatpush2.msra.mxu0 0.0
  %64 = vmatprep.subr.mxu0 0.0
  %65 = vmatpush2.msra.mxu0 0.0
  %66 = vmatprep.subr.mxu0 0.0
  %67 = vmatpush2.msra.mxu0 0.0
  %68 = vmatprep.subr.mxu0 0.0
  %69 = vmatpush2.msra.mxu0 0.0
  %70 = vmatprep.subr.mxu0 0.0
  %71 = vmatpush2.msra.mxu0 0.0
  %72 = vmatprep.subr.mxu0 0.0
  %73 = vmatpush2.msra.mxu0 0.0
  %74 = vmatprep.subr.mxu0 0.0
  %75 = vmatpush2.msra.mxu0 0.0
  %76 = vmatprep.subr.mxu0 0.0
  %77 = vmatpush2.msra.mxu0 0.0
  %78 = vmatprep.subr.mxu0 0.0
  %79 = vmatpush2.msra.mxu0 0.0
  %80 = vmatprep.subr.mxu0 0.0
  %81 = vmatpush2.msra.mxu0 0.0
  %82 = vmatprep.subr.mxu0 0.0
  %83 = vmatpush2.msra.mxu0 0.0
  %84 = vmatprep.subr.mxu0 0.0
  %85 = vmatpush2.msra.mxu0 0.0
  %86 = vmatprep.subr.mxu0 0.0
  %87 = vmatpush2.msra.mxu0 0.0
  %88 = vmatprep.mubr.f32.mxu0 0.0
  %89 = vmatmul.mubr.f32.gmra.mxu0 %v19
  %v90 = vpop.f32.mrf.mxu0
  %v91 = vadd.f32 0.0, %v90
  %v92 = vpop.f32.mrf.mxu0
  %93 = vmatprep.mubr.f32.mxu0 0.0
  %94 = vmatmul.mubr.f32.gmra.mxu0 %v22
  %v95 = vpop.f32.mrf.mxu0
  %v96 = vadd.f32 0.0, %v95
  %v97 = vpop.f32.mrf.mxu0
  %98 = vdwg.mxu0
  %99 = vst [vmem:[%s2] sm:$0xff] %v91
  %100 = vst [vmem:[%s2 + $0x8] sm:$0xff] %v96
  // Predicated region
  $region10: #{llama_pipe_stage.3} parent=0 // pred_check
    _
  $region11: #{llama_pipe_stage.3} parent=0 // pred_check_branch
    %102 = sbr.rel (0) target = $region13
  $region12: #{llama_pipe_stage.3} parent=0 // pred_region
    _
  $region13: #{llama_pipe_stage.3} parent=0 // pred_fallthru
    _
  // Predicated region
  $region14: #{llama_pipe_stage.3} parent=0 // pred_check
    _
  $region15: #{llama_pipe_stage.3} parent=0 // pred_check_branch
    %104 = sbr.rel (0) target = $region17
  $region16: #{llama_pipe_stage.3} parent=0 // pred_region
    _
  $region17: #{llama_pipe_stage.3} parent=0 // pred_fallthru
    _

// kernel: llama_pipe_stage.2
$region0: #{llama_pipe_stage.2}
  #allocation0 [shape = 'u32[]', space=smem, size = 0x4, offset = 0x4, fixed_abs, tag = 'smem constant byte address 0x4 - core index']
  #allocation1 [shape = 'u32[144,128]{1,0:T(1,128)}', space=vmem, size = 0x12000, scoped, tag = 'internal scratch']
  #allocation2 [shape = 'f32[16,32]{1,0:T(8,128)}', space=vmem, size = 0x2000, scoped, tag = 'scratch operand']
  %s0 = inlined_call_operand.vmem [shape: f32[16,32], index: 0, kind: input, shape index: {}]
  %s1 = inlined_call_operand.vmem [shape: f32[1,1,32], index: 1, kind: input, shape index: {}]
  %s2 = inlined_call_operand.vmem [shape: f32[1,1,32], index: 2, kind: input, shape index: {}]
  %s3 = inlined_call_operand.vmem [shape: f32[1,1,32], index: 3, kind: input, shape index: {}]
  %s4 = inlined_call_operand.vmem [shape: f32[1,1,32], index: 4, kind: input, shape index: {}]
  %s5 = inlined_call_operand.vmem [shape: f32[1,32,128], index: 5, kind: input, shape index: {}]
  %s6 = inlined_call_operand.vmem [shape: f32[1,1,128], index: 6, kind: input, shape index: {}]
  %s7 = inlined_call_operand.vmem [shape: f32[1,128,32], index: 7, kind: input, shape index: {}]
  %s8 = inlined_call_operand.vmem [shape: f32[1,1,32], index: 8, kind: input, shape index: {}]
  %s9 = inlined_call_operand.vmem [shape: f32[1,32], index: 9, kind: input, shape index: {}]
  %s10 = inlined_call_operand.vmem [shape: f32[1,32], index: 10, kind: input, shape index: {}]
  %s11 = inlined_call_operand.vmem [shape: f32[16,32], index: 11, kind: output, shape index: {}]
  %s12 = sld [smem:[#allocation0]]
  $region62: #{llama_pipe_stage.2} parent=0
    _
  %s14 = ssub.s32 1, %s12
  %s15 = scalar_select 0, %s14, %s12
  // Predicated region
  $region2: #{llama_pipe_stage.2} parent=0 // pred_check
    _
  $region3: #{llama_pipe_stage.2} parent=0 // pred_check_branch
    %17 = sbr.rel (0) target = $region5
  $region4: #{llama_pipe_stage.2} parent=0 // pred_region
    _
  $region5: #{llama_pipe_stage.2} parent=0 // pred_fallthru
    _
  // Predicated region
  $region6: #{llama_pipe_stage.2} parent=0 // pred_check
    _
  $region7: #{llama_pipe_stage.2} parent=0 // pred_check_branch
    %19 = sbr.rel (0) target = $region9
  $region8: #{llama_pipe_stage.2} parent=0 // pred_region
    _
  $region9: #{llama_pipe_stage.2} parent=0 // pred_fallthru
    _
  // Predicated region
  $region10: #{llama_pipe_stage.2} parent=0 // pred_check
    _
  $region11: #{llama_pipe_stage.2} parent=0 // pred_check_branch
    %21 = sbr.rel (0) target = $region13
  $region12: #{llama_pipe_stage.2} parent=0 // pred_region
    _
  $region13: #{llama_pipe_stage.2} parent=0 // pred_fallthru
    _
  // Predicated region
  $region14: #{llama_pipe_stage.2} parent=0 // pred_check
    _
  $region15: #{llama_pipe_stage.2} parent=0 // pred_check_branch
    %23 = sbr.rel (0) target = $region17
  $region16: #{llama_pipe_stage.2} parent=0 // pred_region
    _
  $region17: #{llama_pipe_stage.2} parent=0 // pred_fallthru
    _
  // Predicated region
  $region18: #{llama_pipe_stage.2} parent=0 // pred_check
    _
  $region19: #{llama_pipe_stage.2} parent=0 // pred_check_branch
    %25 = sbr.rel (0) target = $region21
  $region20: #{llama_pipe_stage.2} parent=0 // pred_region
    _
  $region21: #{llama_pipe_stage.2} parent=0 // pred_fallthru
    _
  // Predicated region
  $region22: #{llama_pipe_stage.2} parent=0 // pred_check
    _
  $region23: #{llama_pipe_stage.2} parent=0 // pred_check_branch
    %27 = sbr.rel (0) target = $region25
  $region24: #{llama_pipe_stage.2} parent=0 // pred_region
    _
  $region25: #{llama_pipe_stage.2} parent=0 // pred_fallthru
    _
  // Predicated region
  $region26: #{llama_pipe_stage.2} parent=0 // pred_check
    _
  $region27: #{llama_pipe_stage.2} parent=0 // pred_check_branch
    %29 = sbr.rel (0) target = $region29
  $region28: #{llama_pipe_stage.2} parent=0 // pred_region
    _
  $region29: #{llama_pipe_stage.2} parent=0 // pred_fallthru
    _
  // Predicated region
  $region30: #{llama_pipe_stage.2} parent=0 // pred_check
    _
  $region31: #{llama_pipe_stage.2} parent=0 // pred_check_branch
    %31 = sbr.rel (0) target = $region33
  $region32: #{llama_pipe_stage.2} parent=0 // pred_region
    _
  $region33: #{llama_pipe_stage.2} parent=0 // pred_fallthru
    _
  // Predicated region
  $region34: #{llama_pipe_stage.2} parent=0 // pred_check
    _
  $region35: #{llama_pipe_stage.2} parent=0 // pred_check_branch
    %33 = sbr.rel (0) target = $region37
  $region36: #{llama_pipe_stage.2} parent=0 // pred_region
    _
  $region37: #{llama_pipe_stage.2} parent=0 // pred_fallthru
    _
  // Predicated region
  $region38: #{llama_pipe_stage.2} parent=0 // pred_check
    _
  $region39: #{llama_pipe_stage.2} parent=0 // pred_check_branch
    %35 = sbr.rel (0) target = $region41
  $region40: #{llama_pipe_stage.2} parent=0 // pred_region
    _
  $region41: #{llama_pipe_stage.2} parent=0 // pred_fallthru
    _
  // Predicated region
  $region42: #{llama_pipe_stage.2} parent=0 // pred_check
    _
  $region43: #{llama_pipe_stage.2} parent=0 // pred_check_branch
    %37 = sbr.rel (0) target = $region45
  $region44: #{llama_pipe_stage.2} parent=0 // pred_region
    _
  $region45: #{llama_pipe_stage.2} parent=0 // pred_fallthru
    _
  %p38 = scmp.eq.s32.totalorder 0, 0
  // Predicated region
  $region46: #{llama_pipe_stage.2} parent=0 // pred_check
    %p39 = pneg %p38
  $region47: #{llama_pipe_stage.2} parent=0 // pred_check_branch
    %41 = sbr.rel (%p39) target = $region49
  $region48: #{llama_pipe_stage.2} parent=0 // pred_region
    %v42 = vld [vmem:[%s0] sm:$0xff]
    %v43 = vld [vmem:[%s0 + $0x8] sm:$0xff]
    %vm44 = vcmask 261120
    %45 = vst.msk [vmem:[#allocation2] sm:$0xff] %vm44, %v42
    %46 = vst.msk [vmem:[#allocation2 + $0x8] sm:$0xff] %vm44, %v43
  $region49: #{llama_pipe_stage.2} parent=0 // pred_fallthru
    _
  %v47 = vld [vmem:[#allocation2] sm:$0xff]
  %v48 = vld [vmem:[#allocation2 + $0x8] sm:$0xff]
  %v49 = vld [vmem:[%s1] sm:$0x1]
  %v50 = vld [vmem:[%s2] sm:$0x1]
  %vm51 = vcmask 261120
  %v52 = vsel %vm51, %v47, 0.0
  %53 = vadd.xlane.f32.xlu0 %v52
  %v54 = vpop.xlane.xlu0 %53
  %v55 = vsel %vm51, %v48, 0.0
  %56 = vadd.xlane.f32.xlu0 %v55
  %v57 = vpop.xlane.xlu0 %56
  %v58 = vrcp.pop 32.0
  %v59 = vmul.f32 %v54, %v58
  %v60 = vmul.f32 %v57, %v58
  %v61 = vmul.f32 %v47, %v47
  %v62 = vmul.f32 %v48, %v48
  %v63 = vsel %vm51, %v61, 0.0
  %64 = vadd.xlane.f32.xlu0 %v63
  %v65 = vpop.xlane.xlu0 %64
  %v66 = vsel %vm51, %v62, 0.0
  %67 = vadd.xlane.f32.xlu0 %v66
  %v68 = vpop.xlane.xlu0 %67
  %v69 = vmul.f32 %v65, %v58
  %v70 = vmul.f32 %v68, %v58
  %v71 = vmul.f32 %v59, %v59
  %v72 = vmul.f32 %v60, %v60
  %v73 = vsub.f32 %v69, %v71
  %v74 = vsub.f32 %v70, %v72
  %v75 = vsub.f32 %v47, %v59
  %v76 = vsub.f32 %v48, %v60
  %v77 = vadd.f32 %v73, 1e-05
  %v78 = vadd.f32 %v74, 1e-05
  %v79 = vrsqrt.pop %v77
  %v80 = vrsqrt.pop %v78
  %v81 = vmul.f32 %v75, %v79
  %v82 = vmul.f32 %v76, %v80
  %v84 = vlaneseq
  %v85 = vshrl.u32 %v84, 7
  %v86 = vsub.s32 0, %v85
  %v87 = vrot.slane %v49, %v86
  %v89 = vmul.f32 %v81, %v87
  %v90 = vmul.f32 %v82, %v87
  %v92 = vlaneseq
  %v93 = vshrl.u32 %v92, 7
  %v94 = vsub.s32 0, %v93
  %v95 = vrot.slane %v50, %v94
  %v97 = vadd.f32 %v89, %v95
  %v98 = vadd.f32 %v90, %v95
  %v99 = vadd.f32 %v47, %v97
  %v100 = vadd.f32 %v48, %v98
  %v101 = vld [vmem:[%s3] sm:$0x1]
  %v102 = vld [vmem:[%s4] sm:$0x1]
  %v103 = vsel %vm51, %v99, 0.0
  %104 = vadd.xlane.f32.xlu0 %v103
  %v105 = vpop.xlane.xlu0 %104
  %v106 = vsel %vm51, %v100, 0.0
  %107 = vadd.xlane.f32.xlu0 %v106
  %v108 = vpop.xlane.xlu0 %107
  %v109 = vmul.f32 %v105, %v58
  %v110 = vmul.f32 %v108, %v58
  %v111 = vmul.f32 %v99, %v99
  %v112 = vmul.f32 %v100, %v100
  %v113 = vsel %vm51, %v111, 0.0
  %114 = vadd.xlane.f32.xlu0 %v113
  %v115 = vpop.xlane.xlu0 %114
  %v116 = vsel %vm51, %v112, 0.0
  %117 = vadd.xlane.f32.xlu0 %v116
  %v118 = vpop.xlane.xlu0 %117
  %v119 = vmul.f32 %v115, %v58
  %v120 = vmul.f32 %v118, %v58
  %v121 = vmul.f32 %v109, %v109
  %v122 = vmul.f32 %v110, %v110
  %v123 = vsub.f32 %v119, %v121
  %v124 = vsub.f32 %v120, %v122
  %v125 = vsub.f32 %v99, %v109
  %v126 = vsub.f32 %v100, %v110
  %v127 = vadd.f32 %v123, 1e-05
  %v128 = vadd.f32 %v124, 1e-05
  %v129 = vrsqrt.pop %v127
  %v130 = vrsqrt.pop %v128
  %v131 = vmul.f32 %v125, %v129
  %v132 = vmul.f32 %v126, %v130
  %v134 = vlaneseq
  %v135 = vshrl.u32 %v134, 7
  %v136 = vsub.s32 0, %v135
  %v137 = vrot.slane %v101, %v136
  %v139 = vmul.f32 %v131, %v137
  %v140 = vmul.f32 %v132, %v137
  %v142 = vlaneseq
  %v143 = vshrl.u32 %v142, 7
  %v144 = vsub.s32 0, %v143
  %v145 = vrot.slane %v102, %v144
  %v147 = vadd.f32 %v139, %v145
  %v148 = vadd.f32 %v140, %v145
  %v149 = vld [vmem:[%s5] sm:$0xff]
  %v150 = vld [vmem:[%s5 + $0x8] sm:$0xff]
  %v151 = vld [vmem:[%s5 + $0x10] sm:$0xff]
  %v152 = vld [vmem:[%s5 + $0x18] sm:$0xff]
  %v153 = vld [vmem:[%s6] sm:$0x1]
  %v155 = vlaneseq
  %v156 = vshrl.u32 %v155, 7
  %v157 = vsub.s32 0, %v156
  %v158 = vrot.slane %v153, %v157
  %v161 = vsel %vm51, %v147, 0
  %v164 = vsel %vm51, %v148, 0
  %166 = vmatprep.subr.mxu0 0.0
  %167 = vmatpush1.msra.mxu0 0.0
  %168 = vmatprep.subr.mxu0 0.0
  %169 = vmatpush1.msra.mxu0 0.0
  %170 = vmatprep.subr.mxu0 0.0
  %171 = vmatpush1.msra.mxu0 0.0
  %172 = vmatprep.subr.mxu0 0.0
  %173 = vmatpush1.msra.mxu0 0.0
  %174 = vmatprep.subr.mxu0 0.0
  %175 = vmatpush1.msra.mxu0 0.0
  %176 = vmatprep.subr.mxu0 0.0
  %177 = vmatpush1.msra.mxu0 0.0
  %178 = vmatprep.subr.mxu0 0.0
  %179 = vmatpush1.msra.mxu0 0.0
  %180 = vmatprep.subr.mxu0 0.0
  %181 = vmatpush1.msra.mxu0 0.0
  %182 = vmatprep.subr.mxu0 0.0
  %183 = vmatpush1.msra.mxu0 0.0
  %184 = vmatprep.subr.mxu0 0.0
  %185 = vmatpush1.msra.mxu0 0.0
  %186 = vmatprep.subr.mxu0 0.0
  %187 = vmatpush1.msra.mxu0 0.0
  %188 = vmatprep.subr.mxu0 0.0
  %189 = vmatpush1.msra.mxu0 0.0
  %190 = vmatprep.subr.mxu0 0.0
  %191 = vmatpush1.msra.mxu0 %v152
  %192 = vmatprep.subr.mxu0 0.0
  %193 = vmatpush1.msra.mxu0 %v151
  %194 = vmatprep.subr.mxu0 0.0
  %195 = vmatpush1.msra.mxu0 %v150
  %196 = vmatprep.subr.mxu0 0.0
  %197 = vmatpush1.msra.mxu0 %v149
  %198 = vmatprep.subr.mxu0 0.0
  %199 = vmatpush2.msra.mxu0 0.0
  %200 = vmatprep.subr.mxu0 0.0
  %201 = vmatpush2.msra.mxu0 0.0
  %202 = vmatprep.subr.mxu0 0.0
  %203 = vmatpush2.msra.mxu0 0.0
  %204 = vmatprep.subr.mxu0 0.0
  %205 = vmatpush2.msra.mxu0 0.0
  %206 = vmatprep.subr.mxu0 0.0
  %207 = vmatpush2.msra.mxu0 0.0
  %208 = vmatprep.subr.mxu0 0.0
  %209 = vmatpush2.msra.mxu0 0.0
  %210 = vmatprep.subr.mxu0 0.0
  %211 = vmatpush2.msra.mxu0 0.0
  %212 = vmatprep.subr.mxu0 0.0
  %213 = vmatpush2.msra.mxu0 0.0
  %214 = vmatprep.subr.mxu0 0.0
  %215 = vmatpush2.msra.mxu0 0.0
  %216 = vmatprep.subr.mxu0 0.0
  %217 = vmatpush2.msra.mxu0 0.0
  %218 = vmatprep.subr.mxu0 0.0
  %219 = vmatpush2.msra.mxu0 0.0
  %220 = vmatprep.subr.mxu0 0.0
  %221 = vmatpush2.msra.mxu0 0.0
  %222 = vmatprep.subr.mxu0 0.0
  %223 = vmatpush2.msra.mxu0 0.0
  %224 = vmatprep.subr.mxu0 0.0
  %225 = vmatpush2.msra.mxu0 0.0
  %226 = vmatprep.subr.mxu0 0.0
  %227 = vmatpush2.msra.mxu0 0.0
  %228 = vmatprep.subr.mxu0 0.0
  %229 = vmatpush2.msra.mxu0 0.0
  %230 = vmatprep.mubr.f32.mxu0 0.0
  %231 = vmatmul.mubr.f32.gmra.mxu0 %v161
  %v232 = vpop.f32.mrf.mxu0
  %v233 = vadd.f32 %v158, %v232
  %v234 = vpop.f32.mrf.mxu0
  %235 = vmatprep.mubr.f32.mxu0 0.0
  %236 = vmatmul.mubr.f32.gmra.mxu0 %v164
  %v237 = vpop.f32.mrf.mxu0
  %v238 = vadd.f32 %v158, %v237
  %v239 = vpop.f32.mrf.mxu0
  %240 = vdwg.mxu0
  %v241 = vmul.f32 %v233, 0.5
  %v242 = vmul.f32 %v238, 0.5
  %v243 = vmul.f32 %v233, 0.70710677
  %v244 = vmul.f32 %v238, 0.70710677
  %v245 = verf.f32.pop %v243
  %v246 = verf.f32.pop %v244
  %v247 = vadd.f32 %v245, 1.0
  %v248 = vadd.f32 %v246, 1.0
  %v249 = vmul.f32 %v241, %v247
  %v250 = vmul.f32 %v242, %v248
  %v251 = vld [vmem:[%s7] sm:$0xff]
  %v252 = vld [vmem:[%s7 + $0x8] sm:$0xff]
  %v253 = vld [vmem:[%s7 + $0x10] sm:$0xff]
  %v254 = vld [vmem:[%s7 + $0x18] sm:$0xff]
  %v255 = vld [vmem:[%s7 + $0x20] sm:$0xff]
  %v256 = vld [vmem:[%s7 + $0x28] sm:$0xff]
  %v257 = vld [vmem:[%s7 + $0x30] sm:$0xff]
  %v258 = vld [vmem:[%s7 + $0x38] sm:$0xff]
  %v259 = vld [vmem:[%s7 + $0x40] sm:$0xff]
  %v260 = vld [vmem:[%s7 + $0x48] sm:$0xff]
  %v261 = vld [vmem:[%s7 + $0x50] sm:$0xff]
  %v262 = vld [vmem:[%s7 + $0x58] sm:$0xff]
  %v263 = vld [vmem:[%s7 + $0x60] sm:$0xff]
  %v264 = vld [vmem:[%s7 + $0x68] sm:$0xff]
  %v265 = vld [vmem:[%s7 + $0x70] sm:$0xff]
  %v266 = vld [vmem:[%s7 + $0x78] sm:$0xff]
  %267 = vmatprep.subr.mxu0 0.0
  %268 = vmatpush1.msra.mxu0 %v266
  %269 = vmatprep.subr.mxu0 0.0
  %270 = vmatpush1.msra.mxu0 %v265
  %271 = vmatprep.subr.mxu0 0.0
  %272 = vmatpush1.msra.mxu0 %v264
  %273 = vmatprep.subr.mxu0 0.0
  %274 = vmatpush1.msra.mxu0 %v263
  %275 = vmatprep.subr.mxu0 0.0
  %276 = vmatpush1.msra.mxu0 %v262
  %277 = vmatprep.subr.mxu0 0.0
  %278 = vmatpush1.msra.mxu0 %v261
  %279 = vmatprep.subr.mxu0 0.0
  %280 = vmatpush1.msra.mxu0 %v260
  %281 = vmatprep.subr.mxu0 0.0
  %282 = vmatpush1.msra.mxu0 %v259
  %283 = vmatprep.subr.mxu0 0.0
  %284 = vmatpush1.msra.mxu0 %v258
  %285 = vmatprep.subr.mxu0 0.0
  %286 = vmatpush1.msra.mxu0 %v257
  %287 = vmatprep.subr.mxu0 0.0
  %288 = vmatpush1.msra.mxu0 %v256
  %289 = vmatprep.subr.mxu0 0.0
  %290 = vmatpush1.msra.mxu0 %v255
  %291 = vmatprep.subr.mxu0 0.0
  %292 = vmatpush1.msra.mxu0 %v254
  %293 = vmatprep.subr.mxu0 0.0
  %294 = vmatpush1.msra.mxu0 %v253
  %295 = vmatprep.subr.mxu0 0.0
  %296 = vmatpush1.msra.mxu0 %v252
  %297 = vmatprep.subr.mxu0 0.0
  %298 = vmatpush1.msra.mxu0 %v251
  %299 = vmatprep.subr.mxu0 0.0
  %300 = vmatpush2.msra.mxu0 0.0
  %301 = vmatprep.subr.mxu0 0.0
  %302 = vmatpush2.msra.mxu0 0.0
  %303 = vmatprep.subr.mxu0 0.0
  %304 = vmatpush2.msra.mxu0 0.0
  %305 = vmatprep.subr.mxu0 0.0
  %306 = vmatpush2.msra.mxu0 0.0
  %307 = vmatprep.subr.mxu0 0.0
  %308 = vmatpush2.msra.mxu0 0.0
  %309 = vmatprep.subr.mxu0 0.0
  %310 = vmatpush2.msra.mxu0 0.0
  %311 = vmatprep.subr.mxu0 0.0
  %312 = vmatpush2.msra.mxu0 0.0
  %313 = vmatprep.subr.mxu0 0.0
  %314 = vmatpush2.msra.mxu0 0.0
  %315 = vmatprep.subr.mxu0 0.0
  %316 = vmatpush2.msra.mxu0 0.0
  %317 = vmatprep.subr.mxu0 0.0
  %318 = vmatpush2.msra.mxu0 0.0
  %319 = vmatprep.subr.mxu0 0.0
  %320 = vmatpush2.msra.mxu0 0.0
  %321 = vmatprep.subr.mxu0 0.0
  %322 = vmatpush2.msra.mxu0 0.0
  %323 = vmatprep.subr.mxu0 0.0
  %324 = vmatpush2.msra.mxu0 0.0
  %325 = vmatprep.subr.mxu0 0.0
  %326 = vmatpush2.msra.mxu0 0.0
  %327 = vmatprep.subr.mxu0 0.0
  %328 = vmatpush2.msra.mxu0 0.0
  %329 = vmatprep.subr.mxu0 0.0
  %330 = vmatpush2.msra.mxu0 0.0
  %331 = vmatprep.mubr.f32.mxu0 0.0
  %332 = vmatmul.mubr.f32.gmra.mxu0 %v249
  %v333 = vpop.f32.mrf.mxu0
  %v334 = vadd.f32 0.0, %v333
  %v335 = vpop.f32.mrf.mxu0
  %336 = vmatprep.mubr.f32.mxu0 0.0
  %337 = vmatmul.mubr.f32.gmra.mxu0 %v250
  %v338 = vpop.f32.mrf.mxu0
  %v339 = vadd.f32 0.0, %v338
  %v340 = vpop.f32.mrf.mxu0
  %341 = vdwg.mxu0
  %v342 = vadd.f32 %v99, %v334
  %v343 = vadd.f32 %v100, %v339
  %v344 = vld [vmem:[%s8] sm:$0x1]
  %v346 = vlaneseq
  %v347 = vshrl.u32 %v346, 7
  %v348 = vsub.s32 0, %v347
  %v349 = vrot.slane %v344, %v348
  %v351 = vadd.f32 %v342, %v349
  %v352 = vadd.f32 %v343, %v349
  %353 = vst.msk [vmem:[#allocation2] sm:$0xff] %vm51, %v351
  %354 = vst.msk [vmem:[#allocation2 + $0x8] sm:$0xff] %vm51, %v352
  // Predicated region
  $region50: #{llama_pipe_stage.2} parent=0 // pred_check
    %p355 = pneg %p38
  $region51: #{llama_pipe_stage.2} parent=0 // pred_check_branch
    %357 = sbr.rel (%p355) target = $region53
  $region52: #{llama_pipe_stage.2} parent=0 // pred_region
    %v358 = vld [vmem:[%s9] sm:$0x1]
    %v359 = vld [vmem:[%s10] sm:$0x1]
    %v360 = vsel %vm51, %v351, 0.0
    %361 = vadd.xlane.f32.xlu0 %v360
    %v362 = vpop.xlane.xlu0 %361
    %v363 = vsel %vm51, %v352, 0.0
    %364 = vadd.xlane.f32.xlu0 %v363
    %v365 = vpop.xlane.xlu0 %364
    %v366 = vmul.f32 %v362, %v58
    %v367 = vmul.f32 %v365, %v58
    %v368 = vmul.f32 %v351, %v351
    %v369 = vmul.f32 %v352, %v352
    %v370 = vsel %vm51, %v368, 0.0
    %371 = vadd.xlane.f32.xlu0 %v370
    %v372 = vpop.xlane.xlu0 %371
    %v373 = vsel %vm51, %v369, 0.0
    %374 = vadd.xlane.f32.xlu0 %v373
    %v375 = vpop.xlane.xlu0 %374
    %v376 = vmul.f32 %v372, %v58
    %v377 = vmul.f32 %v375, %v58
    %v378 = vmul.f32 %v366, %v366
    %v379 = vmul.f32 %v367, %v367
    %v380 = vsub.f32 %v376, %v378
    %v381 = vsub.f32 %v377, %v379
    %v382 = vsub.f32 %v351, %v366
    %v383 = vsub.f32 %v352, %v367
    %v384 = vadd.f32 %v380, 1e-05
    %v385 = vadd.f32 %v381, 1e-05
    %v386 = vrsqrt.pop %v384
    %v387 = vrsqrt.pop %v385
    %v388 = vmul.f32 %v382, %v386
    %v389 = vmul.f32 %v383, %v387
    %v391 = vlaneseq
    %v392 = vshrl.u32 %v391, 7
    %v393 = vsub.s32 0, %v392
    %v394 = vrot.slane %v358, %v393
    %v396 = vmul.f32 %v388, %v394
    %v397 = vmul.f32 %v389, %v394
    %v399 = vlaneseq
    %v400 = vshrl.u32 %v399, 7
    %v401 = vsub.s32 0, %v400
    %v402 = vrot.slane %v359, %v401
    %v404 = vadd.f32 %v396, %v402
    %v405 = vadd.f32 %v397, %v402
    %406 = vst.msk [vmem:[%s11] sm:$0xff] %vm51, %v404
    %407 = vst.msk [vmem:[%s11 + $0x8] sm:$0xff] %vm51, %v405
  $region53: #{llama_pipe_stage.2} parent=0 // pred_fallthru
    _
  // Predicated region
  $region54: #{llama_pipe_stage.2} parent=0 // pred_check
    _
  $region55: #{llama_pipe_stage.2} parent=0 // pred_check_branch
    %409 = sbr.rel (0) target = $region57
  $region56: #{llama_pipe_stage.2} parent=0 // pred_region
    _
  $region57: #{llama_pipe_stage.2} parent=0 // pred_fallthru
    _
  // Predicated region
  $region58: #{llama_pipe_stage.2} parent=0 // pred_check
    _
  $region59: #{llama_pipe_stage.2} parent=0 // pred_check_branch
    %411 = sbr.rel (0) target = $region61
  $region60: #{llama_pipe_stage.2} parent=0 // pred_region
    _
  $region61: #{llama_pipe_stage.2} parent=0 // pred_fallthru
    _

</llo_original>
